<compile_context>
chip_gen: v7x
topology: tpu7x:2x2x1
jax: 0.10.0
libtpu: 0.0.40
codegen_flags: <defaults>
</compile_context>

<pallas_src>
import math

import jax
import jax.numpy as jnp
from jax.experimental import pallas as pl
from jax.experimental.pallas import tpu as pltpu

_C1 = math.sqrt(2.0 / math.pi)            # sqrt(2/pi)
_C2 = 0.044715 * math.sqrt(2.0 / math.pi)  # folded constant: 0.044715 * sqrt(2/pi)


def _gelu_kernel(x_ref, o_ref):
    # Elementwise tanh-approx GELU, computed in f32 regardless of input dtype
    # (matches PyTorch opmath).  Constants are pre-folded so inner needs one
    # fewer VPU multiply per element; tanh goes to the EUP (separate slot).
    x = x_ref[...].astype(jnp.float32)
    inner = x * (jnp.float32(_C1) + jnp.float32(_C2) * (x * x))
    t = jnp.tanh(inner)
    half_x = jnp.float32(0.5) * x
    o_ref[...] = (half_x + half_x * t).astype(o_ref.dtype)


def _gelu_jnp(x):
    # Fused single-pass fallback for tiny / ragged-tail pieces.
    xf = x.astype(jnp.float32)
    y = 0.5 * xf * (1.0 + jnp.tanh(jnp.float32(_C1) * (xf + 0.044715 * (xf ** 3))))
    return y.astype(x.dtype)


def _sublane_multiple(dtype) -> int:
    """Row multiple so sub-32-bit dtypes fill packed sublanes (bf16=[16,128], int8=[32,128])."""
    itemsize = jnp.dtype(dtype).itemsize
    if itemsize >= 4:
        return 8
    if itemsize == 2:
        return 16
    return 32


def _pick_width(m: int, max_width: int = 8192) -> int:
    """Largest multiple of 128 (<= max_width) dividing m exactly (m is 128-aligned)."""
    for k in range(max_width // 128, 0, -1):
        c = 128 * k
        if m % c == 0:
            return c
    return 128


def _block_budget():
    """Generation-aware (block_bytes, vmem_limit_bytes-or-None).

    Sizing: in + out, double-buffered = 4x block.
      v5e : 2 MiB blocks ->  8 MiB, fits the 16 MiB scoped-VMEM default.
      v6e : 4 MiB blocks -> 16 MiB, raise scoped limit to 32 MiB for headroom.
      v7x : 6 MiB blocks -> 24 MiB, raise scoped limit to 36 MiB (64 MiB physical).
    """
    kind = ""
    try:
        kind = jax.devices()[0].device_kind.lower()
    except Exception:
        pass
    if "v5 lite" in kind or "v5e" in kind or "v5lite" in kind:
        return 2 * 1024 * 1024, None
    if "v6" in kind:
        return 4 * 1024 * 1024, 32 * 1024 * 1024
    if "7" in kind:  # "TPU7x" / "TPU v7x"
        return 6 * 1024 * 1024, 36 * 1024 * 1024
    # Unknown generation (v4 / v5p / interpret): safe conservative default.
    return 2 * 1024 * 1024, None


def gelu_pallas(x):
    """Tanh-approximation GELU via a Pallas TPU kernel (matches the nn.Module spec)."""
    orig_shape = x.shape
    orig_dtype = x.dtype
    n = x.size

    # Degenerate / tiny tensors: a single fused jnp pass (1 read + 1 write) is
    # already HBM-optimal and avoids kernel-launch overhead.
    if n < 128 or x.ndim == 0:
        return _gelu_jnp(x)

    flat = x.reshape(-1)
    m = (n // 128) * 128          # 128-aligned prefix handled by the Pallas kernel
    tail = n - m                  # < 128 leftover elements (rare); fused jnp

    itemsize = jnp.dtype(orig_dtype).itemsize
    align = _sublane_multiple(orig_dtype)
    block_bytes, vmem_limit = _block_budget()

    # Lane-dense column width dividing the prefix exactly -> no pad, no slice
    # of the bulk data, purely contiguous full-width row-tile DMAs.
    c = _pick_width(m)
    rows = m // c

    # Row-tile sized by the per-generation byte budget, rounded down to the
    # sublane-packing multiple for this dtype.
    tile_rows = max(align, (block_bytes // (c * itemsize)) // align * align)
    if tile_rows >= rows:
        if rows >= 2 * align:
            # Guarantee >=2 grid steps so megacore (v7x, 2 TCs) gets balanced work.
            half = -(-rows // 2)
            tile_rows = -(-half // align) * align
        else:
            tile_rows = rows      # single block equal to full dim (always legal)
    grid = (pl.cdiv(rows, tile_rows),)  # ragged last row-block is masked in-kernel

    x_main = (flat[:m] if tail else flat).reshape(rows, c)

    n_main = rows * c
    cost = pl.CostEstimate(
        flops=8 * n_main,
        transcendentals=n_main,
        bytes_accessed=2 * n_main * itemsize,
    )

    out_main = pl.pallas_call(
        _gelu_kernel,
        out_shape=jax.ShapeDtypeStruct((rows, c), orig_dtype),
        grid_spec=pltpu.PrefetchScalarGridSpec(
            num_scalar_prefetch=0,
            grid=grid,
            in_specs=[pl.BlockSpec((tile_rows, c), lambda i: (i, 0))],
            out_specs=pl.BlockSpec((tile_rows, c), lambda i: (i, 0)),
        ),
        # 'parallel' lets Mosaic shard row tiles across both v7x TensorCores;
        # neutral on v5e/v6e (single TC).
        compiler_params=pltpu.CompilerParams(
            dimension_semantics=("parallel",),
            vmem_limit_bytes=vmem_limit,
        ),
        cost_estimate=cost,
    )(x_main)

    if tail:
        out_flat = jnp.concatenate([out_main.reshape(-1), _gelu_jnp(flat[m:])])
    else:
        out_flat = out_main.reshape(-1)
    return out_flat.reshape(orig_shape)


def gelu_ref(x):
    xf = x.astype(jnp.float32)
    return (0.5 * xf * (1.0 + jnp.tanh(
        jnp.float32(_C1) * (xf + 0.044715 * xf ** 3)))).astype(x.dtype)


if __name__ == "__main__":
    key = jax.random.PRNGKey(0)

    # Typical transformer-activation-like shape: (batch, seq, hidden).
    x = jax.random.normal(key, (2, 8, 32), dtype=jnp.float32)
    y = jax.block_until_ready(gelu_pallas(x))
    assert y.shape == x.shape and y.dtype == x.dtype
    assert jnp.allclose(y, gelu_ref(x), atol=1e-5, rtol=1e-5)

    # Unaligned element count exercises the aligned-prefix + jnp-tail path.
    x_odd = jax.random.normal(jax.random.PRNGKey(1), (3, 7, 11), dtype=jnp.float32)
    y_odd = jax.block_until_ready(gelu_pallas(x_odd))
    assert y_odd.shape == x_odd.shape and y_odd.dtype == x_odd.dtype
    assert jnp.allclose(y_odd, gelu_ref(x_odd), atol=1e-5, rtol=1e-5)

    # Slightly larger (still small) shape exercises the >=2-step megacore grid.
    x_big = jax.random.normal(jax.random.PRNGKey(2), (8, 128, 128), dtype=jnp.float32)
    y_big = jax.block_until_ready(gelu_pallas(x_big))
    assert jnp.allclose(y_big, gelu_ref(x_big), atol=1e-5, rtol=1e-5)

    # bf16 input (f32 internal compute, bf16 output).
    x_bf = jax.random.normal(jax.random.PRNGKey(3), (2, 16, 256), dtype=jnp.bfloat16)
    y_bf = jax.block_until_ready(gelu_pallas(x_bf))
    assert y_bf.dtype == jnp.bfloat16
    assert jnp.allclose(y_bf.astype(jnp.float32), gelu_ref(x_bf).astype(jnp.float32),
                        atol=2e-2, rtol=2e-2)

    print("KERNEL_OK")
</pallas_src>

<mosaic_0001>
module attributes {stable_mosaic.version = 11 : i64} {
  func.func @_gelu_kernel(%arg0: i32, %arg1: memref<1x512xf32, #tpu.memory_space<vmem>>, %arg2: memref<1x512xf32, #tpu.memory_space<vmem>>) attributes {dimension_semantics = [#tpu.dimension_semantics<parallel>], iteration_bounds = array<i64: 1>, scalar_prefetch = 0 : i64, scratch_operands = 0 : i64, tpu.core_type = #tpu.core_type<tc>, window_params = [{transform_indices = @transform_0, window_bounds = array<i64: 1, 512>}, {transform_indices = @transform_1, window_bounds = array<i64: 1, 512>}]} {
    %c0 = arith.constant 0 : index
    %c0_0 = arith.constant 0 : index
    %0 = vector.load %arg1[%c0, %c0_0] : memref<1x512xf32, #tpu.memory_space<vmem>>, vector<1x512xf32>
    %1 = arith.mulf %0, %0 : vector<1x512xf32>
    %cst = arith.constant 0.0356774069 : f32
    %2 = vector.broadcast %cst : f32 to vector<1x512xf32>
    %3 = arith.mulf %2, %1 : vector<1x512xf32>
    %cst_1 = arith.constant 0.797884583 : f32
    %4 = vector.broadcast %cst_1 : f32 to vector<1x512xf32>
    %5 = arith.addf %4, %3 : vector<1x512xf32>
    %6 = arith.mulf %0, %5 : vector<1x512xf32>
    %7 = math.tanh %6 : vector<1x512xf32>
    %cst_2 = arith.constant 5.000000e-01 : f32
    %8 = vector.broadcast %cst_2 : f32 to vector<1x512xf32>
    %9 = arith.mulf %8, %0 : vector<1x512xf32>
    %10 = arith.mulf %9, %7 : vector<1x512xf32>
    %11 = arith.addf %9, %10 : vector<1x512xf32>
    %c0_3 = arith.constant 0 : index
    %c0_4 = arith.constant 0 : index
    %12 = vector.load %arg2[%c0_3, %c0_4] : memref<1x512xf32, #tpu.memory_space<vmem>>, vector<1x512xf32>
    tpu.vector_store %arg2[%c0_3, %c0_4], %11 {strides = array<i32>} : memref<1x512xf32, #tpu.memory_space<vmem>>, vector<1x512xf32>,
    return
  }
  func.func @transform_0(%arg0: i32) -> (i32, i32) {
    %c0_i32 = arith.constant 0 : i32
    %c0_i32_0 = arith.constant 0 : i32
    return %arg0, %c0_i32 : i32, i32
  }
  func.func @transform_1(%arg0: i32) -> (i32, i32) {
    %c0_i32 = arith.constant 0 : i32
    %c0_i32_0 = arith.constant 0 : i32
    return %arg0, %c0_i32 : i32, i32
  }
}

</mosaic_0001>

<llo_original>
// kernel: tpu_custom_call.1
$region0: #{tpu_custom_call.1}
  #allocation0 [shape = 'u32[]', space=smem, size = 0x4, offset = 0x4, fixed_abs, tag = 'smem constant byte address 0x4 - core index']
  #allocation1 [shape = 'u32[144,128]{1,0:T(1,128)}', space=vmem, size = 0x12000, scoped, tag = 'internal scratch']
  %s0 = inlined_call_operand.hbm [shape: f32[1,512], index: 0, kind: input, shape index: {}]
  %s1 = inlined_call_operand.hbm [shape: f32[1,512], index: 1, kind: output, shape index: {}]
  %s2 = sld [smem:[#allocation0]]
  $region18: #{tpu_custom_call.1} parent=0
    _
  %s4 = ssub.s32 1, %s2
  %s5 = scalar_select 0, %s4, %s2
  $region1: #{tpu_custom_call.1} parent=0
    #allocation2 [shape = 'u8[2048]{0}', space=vmem, size = 0x800, scoped, tag = 'input window, operand 0, single buffered']
    #allocation3 [shape = 's32[1]{0}', space=sflag, size = 0x4, scoped, tag = 'scoped memory for tpu_custom_call.1']
    #allocation4 [shape = 's32[1]{0}', space=sflag, size = 0x4, scoped, tag = 'scoped memory for tpu_custom_call.1']
    #allocation5 [shape = 'u8[2048]{0}', space=vmem, size = 0x800, scoped, tag = 'output window, operand 0, single buffered']
    %6 = vsyncpa [#allocation3], 0
    %7 = vsyncpa [#allocation4], 0
    // Predicated region
    $region2: #{tpu_custom_call.1} parent=1 // pred_check
      _
    $region3: #{tpu_custom_call.1} parent=1 // pred_check_branch
      %9 = sbr.rel (0) target = $region5
    $region4: #{tpu_custom_call.1} parent=1 // pred_region
      %s11 = ssub.s32 64, 64
      %12 = vsyncadd [#allocation3], %s11
      %s14 = sshll.u32 [#allocation2], 4
      %s15 = int_to_ptr.vmem [resolvable:$true] %s14
      %17 = dma.hbm_to_vmem [thread:$0]  %s0, 64, %s15, [#allocation3]
    $region5: #{tpu_custom_call.1} parent=1 // pred_fallthru
      _
    // Predicated region
    $region6: #{tpu_custom_call.1} parent=1 // pred_check
      _
    $region7: #{tpu_custom_call.1} parent=1 // pred_check_branch
      %19 = sbr.rel (0) target = $region9
    $region8: #{tpu_custom_call.1} parent=1 // pred_region
      %20 = dma.done [#allocation3], 64
    $region9: #{tpu_custom_call.1} parent=1 // pred_fallthru
      _
    %v21 = vld [vmem:[#allocation2] sm:$0xf]
    %v22 = vmul.f32 %v21, %v21
    %v23 = vmul.f32 %v22, 0.035677407
    %v24 = vadd.f32 %v23, 0.7978846
    %v25 = vmul.f32 %v21, %v24
    %v26 = vtanh.pop %v25
    %v27 = vmul.f32 %v21, 0.5
    %v28 = vmul.f32 %v27, %v26
    %v29 = vadd.f32 %v27, %v28
    %v30 = vlaneseq
    %vm31 = vcmp.ge.s32.totalorder %v30, 0
    %vm32 = vcmp.lt.s32.totalorder %v30, 512
    %vm33 = vmand %vm31, %vm32
    %34 = vst.msk [vmem:[#allocation5] sm:$0xf] %vm33, %v29
    // Predicated region
    $region10: #{tpu_custom_call.1} parent=1 // pred_check
      _
    $region11: #{tpu_custom_call.1} parent=1 // pred_check_branch
      %36 = sbr.rel (0) target = $region13
    $region12: #{tpu_custom_call.1} parent=1 // pred_region
      %s38 = ssub.s32 64, 64
      %39 = vsyncadd [#allocation4], %s38
      %s41 = sshll.u32 [#allocation5], 4
      %s42 = int_to_ptr.vmem [resolvable:$true] %s41
      %44 = dma.vmem_to_hbm [thread:$0]  %s42, 64, %s1, [#allocation4]
    $region13: #{tpu_custom_call.1} parent=1 // pred_fallthru
      _
    // Predicated region
    $region14: #{tpu_custom_call.1} parent=1 // pred_check
      _
    $region15: #{tpu_custom_call.1} parent=1 // pred_check_branch
      %46 = sbr.rel (0) target = $region17
    $region16: #{tpu_custom_call.1} parent=1 // pred_region
      %47 = dma.done [#allocation4], 64
    $region17: #{tpu_custom_call.1} parent=1 // pred_fallthru
      _
    %48 = vsyncpa [#allocation3], 1
    %49 = vsyncpa [#allocation4], 1

</llo_original>
